<compile_context>
chip_gen: v7x
topology: tpu7x:2x2x1
jax: 0.10.0
libtpu: 0.0.40
codegen_flags: <defaults>
</compile_context>

<pallas_src>
import functools

import jax
import jax.numpy as jnp
from jax import lax
from jax.experimental import pallas as pl
from jax.experimental.pallas import tpu as pltpu

LN_EPS = 1e-5  # nn.LayerNorm default


def _round_up(x, m):
    return (x + m - 1) // m * m


def _cdiv(a, b):
    return (a + b - 1) // b


# ----------------------------------------------------------------------------
# Fused kernel: conv(7x7, s=4, p=3) + bias + LayerNorm(embed_dim), expressed as
# 4 row-shifted matmuls over a space-to-depth halo slab.
# ----------------------------------------------------------------------------
def _patch_embed_kernel(x_ref, w_ref, b_ref, g_ref, beta_ref, o_ref, *,
                        wp, mtile, e_true):
    # x_ref:    ((tile_oh+2)*wp, F)   halo slab of space-to-depth rows
    # w_ref:    (4, F, E_pad)         regrouped conv weight (zero-padded cols)
    # b_ref:    (1, E_pad) f32        conv bias       (zero-padded)
    # g_ref:    (1, E_pad) f32        LayerNorm gamma (zero-padded)
    # beta_ref: (1, E_pad) f32        LayerNorm beta  (zero-padded)
    # o_ref:    (mtile, E_pad)        output rows (tile_oh * wp rows)
    acc = None
    # (di, dj) in {0,1}^2  ->  contiguous row offsets {0, 1, wp, wp+1}
    for k, off in enumerate((0, 1, wp, wp + 1)):
        xv = x_ref[pl.ds(off, mtile), :]
        d = jnp.dot(xv, w_ref[k], preferred_element_type=jnp.float32)
        acc = d if acc is None else acc + d
    x = acc + b_ref[...]

    # LayerNorm over the TRUE embed dim.  Padded columns of x are exactly 0
    # (zero weight columns + zero bias), so plain sums over E_pad equal the
    # sums over the true E; sum-of-squares variance avoids iota/mask work.
    inv_e = jnp.float32(1.0 / e_true)
    mean = jnp.sum(x, axis=-1, keepdims=True) * inv_e
    msq = jnp.sum(x * x, axis=-1, keepdims=True) * inv_e
    var = jnp.maximum(msq - mean * mean, 0.0)
    inv = lax.rsqrt(var + LN_EPS)
    # gamma/beta are 0 in padded lanes -> padded output columns stay exactly 0.
    o_ref[...] = ((x - mean) * inv * g_ref[...] + beta_ref[...]).astype(o_ref.dtype)


def _pick_tile_oh(B, Ho, Wp):
    """Output-row-block height: ~2048 output rows per grid step (multiple of 8),
    but keep >= 4 grid steps when possible so the single 'parallel' grid axis
    still splits across both v7x TensorCores."""
    t = max(1, 2048 // Wp)
    t = min(t, max(Ho, 1))
    t = max(8, _round_up(t, 8))
    while t > 8 and B * _cdiv(Ho, t) < 4:
        t = max(8, _round_up(t // 2, 8))
    return t


# ----------------------------------------------------------------------------
# Host-side glue: image -> space-to-depth halo tiles, weight regrouping,
# pallas_call, final slice/reshape.  Matches the PyTorch forward (dim==4 path).
# ----------------------------------------------------------------------------
def patch_embed_forward(x, size, weight, bias, gamma, beta, *,
                        patch_size=4, conv_pad=3,
                        compute_dtype=jnp.bfloat16, out_dtype=jnp.float32):
    """x: (B, C, H, W) f32 (NCHW, same as PyTorch).
    weight: (E, C, 7, 7), bias/gamma/beta: (E,).
    Returns (out (B, H'*W', E), (H', W'))."""
    del size  # dim==4 path: size unused except via x.shape
    B, C, H, W = x.shape
    E, Cw, kh, kw = weight.shape
    assert Cw == C and patch_size == 4 and conv_pad == 3 and kh == 7 and kw == 7

    Ho = _cdiv(H, patch_size)
    Wo = _cdiv(W, patch_size)
    Wp = Wo + 1                      # +1 junk output column -> contiguous shifted views
    F = 16 * C                       # features per space-to-depth cell (4x4xC)
    E_pad = _round_up(E, 128)        # lane-dense output slab / MXU N dim

    tile_oh = _pick_tile_oh(B, Ho, Wp)
    T = _cdiv(Ho, tile_oh)
    Ho_pad = T * tile_oh
    Mtile = tile_oh * Wp             # output rows per grid step (multiple of 8)
    slab = (tile_oh + 2) * Wp        # input rows per grid step (1 block-row halo)
    nsteps = B * T

    # ---- image -> space-to-depth(4) halo tiles (the only input copy) --------
    # pad: +3 top/left (conv padding, = F.pad-to-multiple-of-4 + conv pad
    # combined since both are zeros), bottom/right up to 4*(Ho_pad+2) x 4*Wp.
    row_hi = 4 * (Ho_pad + 2) - 3 - H
    col_hi = 4 * Wp - 3 - W
    xp = jnp.pad(x, ((0, 0), (0, 0), (3, row_hi), (3, col_hi)))
    xp = xp.astype(compute_dtype).transpose(0, 2, 3, 1)              # NHWC
    s2d = xp.reshape(B, Ho_pad + 2, 4, Wp, 4, C)
    s2d = s2d.transpose(0, 1, 3, 2, 4, 5).reshape(B, (Ho_pad + 2) * Wp, F)
    tiles = jnp.stack(
        [lax.slice_in_dim(s2d, t * Mtile, t * Mtile + slab, axis=1)
         for t in range(T)], axis=1).reshape(nsteps, slab, F)

    # ---- conv weight -> 4 blocks of (16*C, E_pad) ----------------------------
    # W4[di*2+dj, (r*4+s)*C + c, e] = weight[e, c, 4*di+r, 4*dj+s] (0 beyond 7x7)
    wpad = jnp.pad(weight, ((0, 0), (0, 0), (0, 1), (0, 1)))         # (E, C, 8, 8)
    w4 = wpad.reshape(E, C, 2, 4, 2, 4).transpose(2, 4, 3, 5, 1, 0).reshape(4, F, E)
    w4 = jnp.pad(w4, ((0, 0), (0, 0), (0, E_pad - E))).astype(compute_dtype)
    b2 = jnp.pad(bias.astype(jnp.float32), (0, E_pad - E)).reshape(1, E_pad)
    g2 = jnp.pad(gamma.astype(jnp.float32), (0, E_pad - E)).reshape(1, E_pad)
    be2 = jnp.pad(beta.astype(jnp.float32), (0, E_pad - E)).reshape(1, E_pad)

    kernel = functools.partial(_patch_embed_kernel, wp=Wp, mtile=Mtile, e_true=E)
    out = pl.pallas_call(
        kernel,
        out_shape=jax.ShapeDtypeStruct((nsteps * Mtile, E_pad), out_dtype),
        grid_spec=pltpu.PrefetchScalarGridSpec(
            num_scalar_prefetch=0,
            grid=(nsteps,),
            in_specs=[
                pl.BlockSpec((None, slab, F), lambda s: (s, 0, 0)),   # halo slab
                pl.BlockSpec((4, F, E_pad), lambda s: (0, 0, 0)),     # weights (resident)
                pl.BlockSpec((1, E_pad), lambda s: (0, 0)),           # bias
                pl.BlockSpec((1, E_pad), lambda s: (0, 0)),           # gamma
                pl.BlockSpec((1, E_pad), lambda s: (0, 0)),           # beta
            ],
            out_specs=pl.BlockSpec((Mtile, E_pad), lambda s: (s, 0)),
        ),
        compiler_params=pltpu.CompilerParams(
            dimension_semantics=("parallel",)),   # megacore-shardable on v7x
    )(tiles, w4, b2, g2, be2)

    out = out.reshape(B, Ho_pad, Wp, E_pad)[:, :Ho, :Wo, :E]
    return out.reshape(B, Ho * Wo, E), (Ho, Wo)


# ----------------------------------------------------------------------------
# Pure-JAX reference (for correctness check only).
# ----------------------------------------------------------------------------
def _reference(x, weight, bias, gamma, beta, *, stride=4, pad=3):
    y = lax.conv_general_dilated(
        x, weight, window_strides=(stride, stride),
        padding=[(pad, pad), (pad, pad)],
        dimension_numbers=("NCHW", "OIHW", "NCHW"))
    y = y + bias[None, :, None, None]
    B, E, Ho, Wo = y.shape
    y = y.reshape(B, E, Ho * Wo).transpose(0, 2, 1)  # (B, HW, E)
    mean = jnp.mean(y, axis=-1, keepdims=True)
    var = jnp.mean((y - mean) ** 2, axis=-1, keepdims=True)
    y = (y - mean) * lax.rsqrt(var + LN_EPS) * gamma + beta
    return y, (Ho, Wo)


if __name__ == "__main__":
    # Small shapes: B=2, in_chans=4, H=W=16, embed_dim=32, patch_size=4.
    key = jax.random.PRNGKey(0)
    k_x, k_w, k_b, k_g, k_be = jax.random.split(key, 5)

    B, C, H, W = 2, 4, 16, 16
    E, KH, KW = 32, 7, 7

    x = jax.random.normal(k_x, (B, C, H, W), dtype=jnp.float32)
    weight = jax.random.normal(k_w, (E, C, KH, KW), dtype=jnp.float32) * 0.05
    bias = jax.random.normal(k_b, (E,), dtype=jnp.float32) * 0.1
    gamma = 1.0 + 0.1 * jax.random.normal(k_g, (E,), dtype=jnp.float32)
    beta = 0.1 * jax.random.normal(k_be, (E,), dtype=jnp.float32)

    ref, ref_size = _reference(x, weight, bias, gamma, beta)

    # --- f32 compute path: tight check of the fused conv+LN math ------------
    fwd_f32 = jax.jit(functools.partial(
        patch_embed_forward, patch_size=4, conv_pad=3,
        compute_dtype=jnp.float32, out_dtype=jnp.float32))
    out32, size32 = fwd_f32(x, (H, W), weight, bias, gamma, beta)
    out32 = jax.block_until_ready(out32)
    assert out32.shape == (B, (H // 4) * (W // 4), E), out32.shape
    assert tuple(int(s) for s in size32) == ref_size
    assert jnp.allclose(out32, ref, rtol=1e-4, atol=1e-4), float(
        jnp.max(jnp.abs(out32 - ref)))

    # --- bf16 MXU path (default): f32 accumulate, f32 LayerNorm --------------
    fwd_bf16 = jax.jit(functools.partial(
        patch_embed_forward, patch_size=4, conv_pad=3,
        compute_dtype=jnp.bfloat16, out_dtype=jnp.float32))
    out16, size16 = fwd_bf16(x, (H, W), weight, bias, gamma, beta)
    out16 = jax.block_until_ready(out16)
    assert out16.shape == (B, (H // 4) * (W // 4), E), out16.shape
    assert tuple(int(s) for s in size16) == ref_size
    assert jnp.allclose(out16, ref, rtol=5e-2, atol=5e-2), float(
        jnp.max(jnp.abs(out16 - ref)))

    # --- bf16 output slab (halves writeback); LN math stays f32 --------------
    fwd_bf16o = jax.jit(functools.partial(
        patch_embed_forward, patch_size=4, conv_pad=3,
        compute_dtype=jnp.bfloat16, out_dtype=jnp.bfloat16))
    out16o, _ = fwd_bf16o(x, (H, W), weight, bias, gamma, beta)
    out16o = jax.block_until_ready(out16o)
    assert out16o.dtype == jnp.bfloat16 and out16o.shape == out16.shape
    assert bool(jnp.all(jnp.isfinite(out16o.astype(jnp.float32))))

    print("KERNEL_OK")
</pallas_src>

<mosaic_0001>
module attributes {stable_mosaic.version = 11 : i64} {
  func.func @_patch_embed_kernel(%arg0: i32, %arg1: memref<1x50x64xf32, #tpu.memory_space<vmem>>, %arg2: memref<4x64x128xf32, #tpu.memory_space<vmem>>, %arg3: memref<1x128xf32, #tpu.memory_space<vmem>>, %arg4: memref<1x128xf32, #tpu.memory_space<vmem>>, %arg5: memref<1x128xf32, #tpu.memory_space<vmem>>, %arg6: memref<40x128xf32, #tpu.memory_space<vmem>>) attributes {dimension_semantics = [#tpu.dimension_semantics<parallel>], iteration_bounds = array<i64: 2>, scalar_prefetch = 0 : i64, scratch_operands = 0 : i64, tpu.core_type = #tpu.core_type<tc>, window_params = [{transform_indices = @transform_0, window_bounds = array<i64: 1, 50, 64>}, {pipeline_mode = #tpu.pipeline_mode<synchronous>, transform_indices = @transform_1, window_bounds = array<i64: 4, 64, 128>}, {pipeline_mode = #tpu.pipeline_mode<synchronous>, transform_indices = @transform_2, window_bounds = array<i64: 1, 128>}, {pipeline_mode = #tpu.pipeline_mode<synchronous>, transform_indices = @transform_3, window_bounds = array<i64: 1, 128>}, {pipeline_mode = #tpu.pipeline_mode<synchronous>, transform_indices = @transform_4, window_bounds = array<i64: 1, 128>}, {transform_indices = @transform_5, window_bounds = array<i64: 40, 128>}]} {
    %c0 = arith.constant 0 : index
    %c0_0 = arith.constant 0 : index
    %c0_1 = arith.constant 0 : index
    %0 = vector.load %arg1[%c0, %c0_0, %c0_1] : memref<1x50x64xf32, #tpu.memory_space<vmem>>, vector<1x40x64xf32>
    %1 = vector.shape_cast %0 : vector<1x40x64xf32> to vector<40x64xf32>
    %c0_2 = arith.constant 0 : index
    %c0_3 = arith.constant 0 : index
    %c0_4 = arith.constant 0 : index
    %2 = vector.load %arg2[%c0_2, %c0_3, %c0_4] : memref<4x64x128xf32, #tpu.memory_space<vmem>>, vector<1x64x128xf32>
    %3 = vector.shape_cast %2 : vector<1x64x128xf32> to vector<64x128xf32>
    %cst = arith.constant dense<0.000000e+00> : vector<40x128xf32>
    %4 = tpu.matmul %1, %3, %cst {dimension_numbers = #tpu.dot_dimension_numbers<[1], [0], [0], [1], [0, 0, 1, 1], [], []>} : vector<40x64xf32>, vector<64x128xf32>, vector<40x128xf32> -> vector<40x128xf32>
    %c0_5 = arith.constant 0 : index
    %c1 = arith.constant 1 : index
    %c0_6 = arith.constant 0 : index
    %5 = vector.load %arg1[%c0_5, %c1, %c0_6] : memref<1x50x64xf32, #tpu.memory_space<vmem>>, vector<1x40x64xf32>
    %6 = vector.shape_cast %5 : vector<1x40x64xf32> to vector<40x64xf32>
    %c1_7 = arith.constant 1 : index
    %c0_8 = arith.constant 0 : index
    %c0_9 = arith.constant 0 : index
    %7 = vector.load %arg2[%c1_7, %c0_8, %c0_9] : memref<4x64x128xf32, #tpu.memory_space<vmem>>, vector<1x64x128xf32>
    %8 = vector.shape_cast %7 : vector<1x64x128xf32> to vector<64x128xf32>
    %cst_10 = arith.constant dense<0.000000e+00> : vector<40x128xf32>
    %9 = tpu.matmul %6, %8, %cst_10 {dimension_numbers = #tpu.dot_dimension_numbers<[1], [0], [0], [1], [0, 0, 1, 1], [], []>} : vector<40x64xf32>, vector<64x128xf32>, vector<40x128xf32> -> vector<40x128xf32>
    %10 = arith.addf %4, %9 : vector<40x128xf32>
    %c0_11 = arith.constant 0 : index
    %c5 = arith.constant 5 : index
    %c0_12 = arith.constant 0 : index
    %11 = vector.load %arg1[%c0_11, %c5, %c0_12] : memref<1x50x64xf32, #tpu.memory_space<vmem>>, vector<1x40x64xf32>
    %12 = vector.shape_cast %11 : vector<1x40x64xf32> to vector<40x64xf32>
    %c2 = arith.constant 2 : index
    %c0_13 = arith.constant 0 : index
    %c0_14 = arith.constant 0 : index
    %13 = vector.load %arg2[%c2, %c0_13, %c0_14] : memref<4x64x128xf32, #tpu.memory_space<vmem>>, vector<1x64x128xf32>
    %14 = vector.shape_cast %13 : vector<1x64x128xf32> to vector<64x128xf32>
    %cst_15 = arith.constant dense<0.000000e+00> : vector<40x128xf32>
    %15 = tpu.matmul %12, %14, %cst_15 {dimension_numbers = #tpu.dot_dimension_numbers<[1], [0], [0], [1], [0, 0, 1, 1], [], []>} : vector<40x64xf32>, vector<64x128xf32>, vector<40x128xf32> -> vector<40x128xf32>
    %16 = arith.addf %10, %15 : vector<40x128xf32>
    %c0_16 = arith.constant 0 : index
    %c6 = arith.constant 6 : index
    %c0_17 = arith.constant 0 : index
    %17 = vector.load %arg1[%c0_16, %c6, %c0_17] : memref<1x50x64xf32, #tpu.memory_space<vmem>>, vector<1x40x64xf32>
    %18 = vector.shape_cast %17 : vector<1x40x64xf32> to vector<40x64xf32>
    %c3 = arith.constant 3 : index
    %c0_18 = arith.constant 0 : index
    %c0_19 = arith.constant 0 : index
    %19 = vector.load %arg2[%c3, %c0_18, %c0_19] : memref<4x64x128xf32, #tpu.memory_space<vmem>>, vector<1x64x128xf32>
    %20 = vector.shape_cast %19 : vector<1x64x128xf32> to vector<64x128xf32>
    %cst_20 = arith.constant dense<0.000000e+00> : vector<40x128xf32>
    %21 = tpu.matmul %18, %20, %cst_20 {dimension_numbers = #tpu.dot_dimension_numbers<[1], [0], [0], [1], [0, 0, 1, 1], [], []>} : vector<40x64xf32>, vector<64x128xf32>, vector<40x128xf32> -> vector<40x128xf32>
    %22 = arith.addf %16, %21 : vector<40x128xf32>
    %c0_21 = arith.constant 0 : index
    %c0_22 = arith.constant 0 : index
    %23 = vector.load %arg3[%c0_21, %c0_22] : memref<1x128xf32, #tpu.memory_space<vmem>>, vector<1x128xf32>
    %24 = vector.broadcast %23 : vector<1x128xf32> to vector<40x128xf32>
    %25 = arith.addf %22, %24 : vector<40x128xf32>
    %cst_23 = arith.constant dense<0.000000e+00> : vector<40xf32>
    %26 = vector.multi_reduction <add>, %25, %cst_23 [1] : vector<40x128xf32> to vector<40xf32>
    %27 = vector.shape_cast %26 : vector<40xf32> to vector<40x1xf32>
    %cst_24 = arith.constant 3.125000e-02 : f32
    %28 = vector.broadcast %cst_24 : f32 to vector<40x1xf32>
    %29 = arith.mulf %27, %28 : vector<40x1xf32>
    %30 = arith.mulf %25, %25 : vector<40x128xf32>
    %cst_25 = arith.constant dense<0.000000e+00> : vector<40xf32>
    %31 = vector.multi_reduction <add>, %30, %cst_25 [1] : vector<40x128xf32> to vector<40xf32>
    %32 = vector.shape_cast %31 : vector<40xf32> to vector<40x1xf32>
    %cst_26 = arith.constant 3.125000e-02 : f32
    %33 = vector.broadcast %cst_26 : f32 to vector<40x1xf32>
    %34 = arith.mulf %32, %33 : vector<40x1xf32>
    %35 = arith.mulf %29, %29 : vector<40x1xf32>
    %36 = arith.subf %34, %35 : vector<40x1xf32>
    %cst_27 = arith.constant 0.000000e+00 : f32
    %37 = vector.broadcast %cst_27 : f32 to vector<40x1xf32>
    %38 = arith.maximumf %36, %37 : vector<40x1xf32>
    %cst_28 = arith.constant 9.99999974E-6 : f32
    %39 = vector.broadcast %cst_28 : f32 to vector<40x1xf32>
    %40 = arith.addf %38, %39 : vector<40x1xf32>
    %41 = math.rsqrt %40 : vector<40x1xf32>
    %42 = vector.broadcast %29 : vector<40x1xf32> to vector<40x128xf32>
    %43 = arith.subf %25, %42 : vector<40x128xf32>
    %44 = vector.broadcast %41 : vector<40x1xf32> to vector<40x128xf32>
    %45 = arith.mulf %43, %44 : vector<40x128xf32>
    %c0_29 = arith.constant 0 : index
    %c0_30 = arith.constant 0 : index
    %46 = vector.load %arg4[%c0_29, %c0_30] : memref<1x128xf32, #tpu.memory_space<vmem>>, vector<1x128xf32>
    %47 = vector.broadcast %46 : vector<1x128xf32> to vector<40x128xf32>
    %48 = arith.mulf %45, %47 : vector<40x128xf32>
    %c0_31 = arith.constant 0 : index
    %c0_32 = arith.constant 0 : index
    %49 = vector.load %arg5[%c0_31, %c0_32] : memref<1x128xf32, #tpu.memory_space<vmem>>, vector<1x128xf32>
    %50 = vector.broadcast %49 : vector<1x128xf32> to vector<40x128xf32>
    %51 = arith.addf %48, %50 : vector<40x128xf32>
    %c0_33 = arith.constant 0 : index
    %c0_34 = arith.constant 0 : index
    %52 = vector.load %arg6[%c0_33, %c0_34] : memref<40x128xf32, #tpu.memory_space<vmem>>, vector<40x128xf32>
    tpu.vector_store %arg6[%c0_33, %c0_34], %51 {strides = array<i32>} : memref<40x128xf32, #tpu.memory_space<vmem>>, vector<40x128xf32>,
    return
  }
  func.func @transform_0(%arg0: i32) -> (i32, i32, i32) {
    %c0_i32 = arith.constant 0 : i32
    %c0_i32_0 = arith.constant 0 : i32
    %c0_i32_1 = arith.constant 0 : i32
    return %arg0, %c0_i32, %c0_i32_0 : i32, i32, i32
  }
  func.func @transform_1(%arg0: i32) -> (i32, i32, i32) {
    %c0_i32 = arith.constant 0 : i32
    %c0_i32_0 = arith.constant 0 : i32
    %c0_i32_1 = arith.constant 0 : i32
    %c0_i32_2 = arith.constant 0 : i32
    return %c0_i32, %c0_i32_0, %c0_i32_1 : i32, i32, i32
  }
  func.func @transform_2(%arg0: i32) -> (i32, i32) {
    %c0_i32 = arith.constant 0 : i32
    %c0_i32_0 = arith.constant 0 : i32
    %c0_i32_1 = arith.constant 0 : i32
    return %c0_i32, %c0_i32_0 : i32, i32
  }
  func.func @transform_3(%arg0: i32) -> (i32, i32) {
    %c0_i32 = arith.constant 0 : i32
    %c0_i32_0 = arith.constant 0 : i32
    %c0_i32_1 = arith.constant 0 : i32
    return %c0_i32, %c0_i32_0 : i32, i32
  }
  func.func @transform_4(%arg0: i32) -> (i32, i32) {
    %c0_i32 = arith.constant 0 : i32
    %c0_i32_0 = arith.constant 0 : i32
    %c0_i32_1 = arith.constant 0 : i32
    return %c0_i32, %c0_i32_0 : i32, i32
  }
  func.func @transform_5(%arg0: i32) -> (i32, i32) {
    %c0_i32 = arith.constant 0 : i32
    %c0_i32_0 = arith.constant 0 : i32
    return %arg0, %c0_i32 : i32, i32
  }
}

</mosaic_0001>

<llo_original>
// kernel: patch_embed_forward.1
$region0: #{patch_embed_forward.1}
  #allocation0 [shape = 'u32[]', space=smem, size = 0x4, offset = 0x4, fixed_abs, tag = 'smem constant byte address 0x4 - core index']
  #allocation1 [shape = 'u32[144,128]{1,0:T(1,128)}', space=vmem, size = 0x12000, scoped, tag = 'internal scratch']
  %s0 = inlined_call_operand.vmem [shape: f32[2,50,64], index: 0, kind: input, shape index: {}]
  %s1 = inlined_call_operand.vmem [shape: f32[4,64,128], index: 1, kind: input, shape index: {}]
  %s2 = inlined_call_operand.vmem [shape: f32[1,128], index: 2, kind: input, shape index: {}]
  %s3 = inlined_call_operand.vmem [shape: f32[1,128], index: 3, kind: input, shape index: {}]
  %s4 = inlined_call_operand.vmem [shape: f32[1,128], index: 4, kind: input, shape index: {}]
  %s5 = inlined_call_operand.vmem [shape: f32[80,128], index: 5, kind: output, shape index: {}]
  %s6 = sld [smem:[#allocation0]]
  $region53: #{patch_embed_forward.1} parent=0
    _
  %s8 = ssub.s32 1, %s6
  %s9 = scalar_select 0, %s8, %s6
  loop: start=0, step=1, limit=4
  $region2: #{patch_embed_forward.1} parent=0 // loop_pre_header
    _
  $region3: #{patch_embed_forward.1} parent=0 // loop_header
    %s11 = sphi 0, %s15
    %p12 = scmp.ge.s32.totalorder %s11, 4
    %s21 = sphi 0, %s23
    %s24 = sphi 0, %s21
    %s25 = sphi 0, %s24
    %s41 = sphi 0, %s25
    %s45 = sphi 0, %s45
    %s47 = sphi 0, %s45
    %s48 = sphi 0, %s47
    %s62 = sphi 0, %s48
    %s66 = sphi 0, %s66
    %s68 = sphi 0, %s66
    %s69 = sphi 0, %s68
    %s83 = sphi 0, %s69
    %s87 = sphi 0, %s87
    %s89 = sphi 0, %s87
    %s90 = sphi 0, %s89
    %s104 = sphi 0, %s90
    %s108 = sphi 0, %s108
    %s110 = sphi 0, %s108
    %s111 = sphi 0, %s110
    %s125 = sphi 0, %s111
    %s131 = sphi 0, %s133
    %s134 = sphi 0, %s131
    %s135 = sphi 0, %s134
    %s151 = sphi 0, %s135
  $region4: #{patch_embed_forward.1} parent=0 // loop_header_branch
    %14 = sbr.rel (%p12) target = $region8
  $region5: #{patch_embed_forward.1} parent=0 // loop_body
    %s16 = ssub.s32 %s11, 1
    %s17 = ssub.s32 %s11, 2
    %s18 = sadd.s32 %s11, 1
    %s19 = ssub.s32 %s11, %s18
    %p20 = scmp.eq.s32.totalorder %s19, 0
    %s22 = sadd.s32 %s21, 1
    %s23 = scalar_select %p20, %s21, %s22
    %p26 = pneg %p20
    %p27 = scmp.eq.s32.totalorder %s11, 1
    %p28 = por %p26, %p27
    %p29 = scmp.ne.s32.totalorder %s21, %s24
    %p30 = scmp.eq.s32.totalorder %s11, 0
    %p31 = por %p29, %p30
    %p32 = scmp.ne.s32.totalorder %s21, %s24
    %p33 = scmp.eq.s32.totalorder %s16, 1
    %p34 = por %p32, %p33
    %p35 = scmp.ne.s32.totalorder %s24, %s25
    %p36 = scmp.eq.s32.totalorder %s16, 0
    %p37 = por %p35, %p36
    %p38 = scmp.ne.s32.totalorder %s24, %s25
    %p39 = scmp.eq.s32.totalorder %s17, 1
    %p40 = por %p38, %p39
    %p42 = scmp.ne.s32.totalorder %s25, %s41
    %p43 = scmp.eq.s32.totalorder %s17, 0
    %p44 = por %p42, %p43
    %s46 = sadd.s32 %s45, 1
    %p49 = scmp.eq.s32.totalorder %s11, 1
    %p50 = scmp.ne.s32.totalorder %s45, %s47
    %p51 = scmp.eq.s32.totalorder %s11, 0
    %p52 = por %p50, %p51
    %p53 = scmp.ne.s32.totalorder %s45, %s47
    %p54 = scmp.eq.s32.totalorder %s16, 1
    %p55 = por %p53, %p54
    %p56 = scmp.ne.s32.totalorder %s47, %s48
    %p57 = scmp.eq.s32.totalorder %s16, 0
    %p58 = por %p56, %p57
    %p59 = scmp.ne.s32.totalorder %s47, %s48
    %p60 = scmp.eq.s32.totalorder %s17, 1
    %p61 = por %p59, %p60
    %p63 = scmp.ne.s32.totalorder %s48, %s62
    %p64 = scmp.eq.s32.totalorder %s17, 0
    %p65 = por %p63, %p64
    %s67 = sadd.s32 %s66, 1
    %p70 = scmp.eq.s32.totalorder %s11, 1
    %p71 = scmp.ne.s32.totalorder %s66, %s68
    %p72 = scmp.eq.s32.totalorder %s11, 0
    %p73 = por %p71, %p72
    %p74 = scmp.ne.s32.totalorder %s66, %s68
    %p75 = scmp.eq.s32.totalorder %s16, 1
    %p76 = por %p74, %p75
    %p77 = scmp.ne.s32.totalorder %s68, %s69
    %p78 = scmp.eq.s32.totalorder %s16, 0
    %p79 = por %p77, %p78
    %p80 = scmp.ne.s32.totalorder %s68, %s69
    %p81 = scmp.eq.s32.totalorder %s17, 1
    %p82 = por %p80, %p81
    %p84 = scmp.ne.s32.totalorder %s69, %s83
    %p85 = scmp.eq.s32.totalorder %s17, 0
    %p86 = por %p84, %p85
    %s88 = sadd.s32 %s87, 1
    %p91 = scmp.eq.s32.totalorder %s11, 1
    %p92 = scmp.ne.s32.totalorder %s87, %s89
    %p93 = scmp.eq.s32.totalorder %s11, 0
    %p94 = por %p92, %p93
    %p95 = scmp.ne.s32.totalorder %s87, %s89
    %p96 = scmp.eq.s32.totalorder %s16, 1
    %p97 = por %p95, %p96
    %p98 = scmp.ne.s32.totalorder %s89, %s90
    %p99 = scmp.eq.s32.totalorder %s16, 0
    %p100 = por %p98, %p99
    %p101 = scmp.ne.s32.totalorder %s89, %s90
    %p102 = scmp.eq.s32.totalorder %s17, 1
    %p103 = por %p101, %p102
    %p105 = scmp.ne.s32.totalorder %s90, %s104
    %p106 = scmp.eq.s32.totalorder %s17, 0
    %p107 = por %p105, %p106
    %s109 = sadd.s32 %s108, 1
    %p112 = scmp.eq.s32.totalorder %s11, 1
    %p113 = scmp.ne.s32.totalorder %s108, %s110
    %p114 = scmp.eq.s32.totalorder %s11, 0
    %p115 = por %p113, %p114
    %p116 = scmp.ne.s32.totalorder %s108, %s110
    %p117 = scmp.eq.s32.totalorder %s16, 1
    %p118 = por %p116, %p117
    %p119 = scmp.ne.s32.totalorder %s110, %s111
    %p120 = scmp.eq.s32.totalorder %s16, 0
    %p121 = por %p119, %p120
    %p122 = scmp.ne.s32.totalorder %s110, %s111
    %p123 = scmp.eq.s32.totalorder %s17, 1
    %p124 = por %p122, %p123
    %p126 = scmp.ne.s32.totalorder %s111, %s125
    %p127 = scmp.eq.s32.totalorder %s17, 0
    %p128 = por %p126, %p127
    %s129 = ssub.s32 %s11, %s18
    %p130 = scmp.eq.s32.totalorder %s129, 0
    %s132 = sadd.s32 %s131, 1
    %s133 = scalar_select %p130, %s131, %s132
    %p136 = pneg %p130
    %p137 = scmp.eq.s32.totalorder %s11, 1
    %p138 = por %p136, %p137
    %p139 = scmp.ne.s32.totalorder %s131, %s134
    %p140 = scmp.eq.s32.totalorder %s11, 0
    %p141 = por %p139, %p140
    %p142 = scmp.ne.s32.totalorder %s131, %s134
    %p143 = scmp.eq.s32.totalorder %s16, 1
    %p144 = por %p142, %p143
    %p145 = scmp.ne.s32.totalorder %s134, %s135
    %p146 = scmp.eq.s32.totalorder %s16, 0
    %p147 = por %p145, %p146
    %p148 = scmp.ne.s32.totalorder %s134, %s135
    %p149 = scmp.eq.s32.totalorder %s17, 1
    %p150 = por %p148, %p149
    %p152 = scmp.ne.s32.totalorder %s135, %s151
    %p153 = scmp.eq.s32.totalorder %s17, 0
    %p154 = por %p152, %p153
    %p155 = scmp.le.s32.totalorder 1, %s11
    %p156 = scmp.lt.s32.totalorder %s11, 3
    %p157 = pnand %p155, %p156
    %p158 = pneg %p157
    // Predicated region
    $region9: #{patch_embed_forward.1} parent=5 // pred_check
      _
    $region10: #{patch_embed_forward.1} parent=5 // pred_check_branch
      %160 = sbr.rel (%p157) target = $region12
    $region11: #{patch_embed_forward.1} parent=5 // pred_region
      %s161 = ssub.s32 %s11, 1
      // Predicated region
      $region13: #{patch_embed_forward.1} parent=11 // pred_check
        %p162 = pneg %p58
      $region14: #{patch_embed_forward.1} parent=11 // pred_check_branch
        %164 = sbr.rel (%p162) target = $region16
      $region15: #{patch_embed_forward.1} parent=11 // pred_region
        _
      $region16: #{patch_embed_forward.1} parent=11 // pred_fallthru
        _
      // Predicated region
      $region17: #{patch_embed_forward.1} parent=11 // pred_check
        %p165 = pneg %p79
      $region18: #{patch_embed_forward.1} parent=11 // pred_check_branch
        %167 = sbr.rel (%p165) target = $region20
      $region19: #{patch_embed_forward.1} parent=11 // pred_region
        _
      $region20: #{patch_embed_forward.1} parent=11 // pred_fallthru
        _
      // Predicated region
      $region21: #{patch_embed_forward.1} parent=11 // pred_check
        %p168 = pneg %p100
      $region22: #{patch_embed_forward.1} parent=11 // pred_check_branch
        %170 = sbr.rel (%p168) target = $region24
      $region23: #{patch_embed_forward.1} parent=11 // pred_region
        _
      $region24: #{patch_embed_forward.1} parent=11 // pred_fallthru
        _
      // Predicated region
      $region25: #{patch_embed_forward.1} parent=11 // pred_check
        %p171 = pneg %p121
      $region26: #{patch_embed_forward.1} parent=11 // pred_check_branch
        %173 = sbr.rel (%p171) target = $region28
      $region27: #{patch_embed_forward.1} parent=11 // pred_region
        _
      $region28: #{patch_embed_forward.1} parent=11 // pred_fallthru
        _
    $region12: #{patch_embed_forward.1} parent=5 // pred_fallthru
      _
    %p174 = scmp.lt.s32.totalorder %s11, 2
    // Predicated region
    $region29: #{patch_embed_forward.1} parent=5 // pred_check
      %p175 = pneg %p174
    $region30: #{patch_embed_forward.1} parent=5 // pred_check_branch
      %177 = sbr.rel (%p175) target = $region32
    $region31: #{patch_embed_forward.1} parent=5 // pred_region
      // Predicated region
      $region33: #{patch_embed_forward.1} parent=31 // pred_check
        %p178 = pneg %p31
      $region34: #{patch_embed_forward.1} parent=31 // pred_check_branch
        %180 = sbr.rel (%p178) target = $region36
      $region35: #{patch_embed_forward.1} parent=31 // pred_region
        %p181 = scmp.lt.s32.totalorder %s11, 1
        %s182 = scalar_select %p181, %s11, 1
        %s183 = smul.addr %s182, 7
        %s184 = smul.addr %s183, 8
        %s185 = scalar_lea.vmem %s0, %s184
      $region36: #{patch_embed_forward.1} parent=31 // pred_fallthru
        _
    $region32: #{patch_embed_forward.1} parent=5 // pred_fallthru
      _
    %p186 = scmp.le.s32.totalorder 1, %s11
    %p187 = scmp.lt.s32.totalorder %s11, 3
    %p188 = pnand %p186, %p187
    %p189 = pneg %p188
    // Predicated region
    $region37: #{patch_embed_forward.1} parent=5 // pred_check
      _
    $region38: #{patch_embed_forward.1} parent=5 // pred_check_branch
      %191 = sbr.rel (%p188) target = $region40
    $region39: #{patch_embed_forward.1} parent=5 // pred_region
      %s192 = ssub.s32 %s11, 1
      %p193 = scmp.lt.s32.totalorder %s16, 1
      %s194 = scalar_select %p193, %s16, 1
      %s195 = smul.addr %s194, 7
      %s196 = smul.addr %s195, 8
      %s197 = scalar_lea.vmem %s0, %s196
      %p198 = pneg %p37
      %p199 = pneg %p34
      %p200 = pneg %p58
      %p201 = pneg %p55
      %p202 = pneg %p79
      %p203 = pneg %p76
      %p204 = pneg %p100
      %p205 = pneg %p97
      %p206 = pneg %p121
      %p207 = pneg %p118
      %p208 = pneg %p147
      %p209 = pneg %p144
      %s210 = smul.u32 5, %s16
      %p211 = scmp.lt.s32.totalorder %s210, 9
      %s212 = scalar_select %p211, %s210, 9
      %s213 = smul.addr %s212, 8
      %s214 = scalar_lea.vmem %s5, %s213
      %p215 = scmp.lt.s32.totalorder %s16, 1
      %s216 = scalar_select %p215, %s16, 1
      %s217 = smul.addr %s216, 7
      %s218 = smul.addr %s217, 8
      %s219 = scalar_lea.vmem %s0, %s218
      %s220 = smul.u32 5, %s16
      %p221 = scmp.lt.s32.totalorder %s220, 9
      %s222 = scalar_select %p221, %s220, 9
      %s223 = smul.addr %s222, 8
      %s224 = scalar_lea.vmem %s5, %s223
      %s225 = smul.u32 5, %s16
      %v226 = vld [vmem:[%s219] sm:$0xff]
      %v227 = vld [vmem:[%s219 + $0x8] sm:$0xff]
      %v228 = vld [vmem:[%s219 + $0x10] sm:$0xff]
      %v229 = vld [vmem:[%s219 + $0x18] sm:$0xff]
      %v230 = vld [vmem:[%s219 + $0x20] sm:$0xff]
      %v231 = vld [vmem:[%s1] sm:$0xff]
      %v232 = vld [vmem:[%s1 + $0x8] sm:$0xff]
      %v233 = vld [vmem:[%s1 + $0x10] sm:$0xff]
      %v234 = vld [vmem:[%s1 + $0x18] sm:$0xff]
      %v235 = vld [vmem:[%s1 + $0x20] sm:$0xff]
      %v236 = vld [vmem:[%s1 + $0x28] sm:$0xff]
      %v237 = vld [vmem:[%s1 + $0x30] sm:$0xff]
      %v238 = vld [vmem:[%s1 + $0x38] sm:$0xff]
      %v239 = vld [vmem:[%s219 + $0x1] sm:$0xff]
      %v240 = vld [vmem:[%s219 + $0x9] sm:$0xff]
      %v241 = vld [vmem:[%s219 + $0x11] sm:$0xff]
      %v242 = vld [vmem:[%s219 + $0x19] sm:$0xff]
      %v243 = vld [vmem:[%s219 + $0x21] sm:$0xff]
      %s244 = scalar_lea.vmem %s1, 64
      %v245 = vld [vmem:[%s244] sm:$0xff]
      %v246 = vld [vmem:[%s244 + $0x8] sm:$0xff]
      %v247 = vld [vmem:[%s244 + $0x10] sm:$0xff]
      %v248 = vld [vmem:[%s244 + $0x18] sm:$0xff]
      %v249 = vld [vmem:[%s244 + $0x20] sm:$0xff]
      %v250 = vld [vmem:[%s244 + $0x28] sm:$0xff]
      %v251 = vld [vmem:[%s244 + $0x30] sm:$0xff]
      %v252 = vld [vmem:[%s244 + $0x38] sm:$0xff]
      %vm253 = vcmask 523264
      %v255 = vsel %vm253, %v239, 0
      %v258 = vsel %vm253, %v240, 0
      %v261 = vsel %vm253, %v241, 0
      %v264 = vsel %vm253, %v242, 0
      %v267 = vsel %vm253, %v243, 0
      %269 = vmatprep.subr.mxu0 0.0
      %270 = vmatpush1.msra.mxu0 %v245
      %271 = vmatprep.subr.mxu0 0.0
      %272 = vmatpush1.msra.mxu0 %v246
      %273 = vmatprep.subr.mxu0 0.0
      %274 = vmatpush1.msra.mxu0 %v247
      %275 = vmatprep.subr.mxu0 0.0
      %276 = vmatpush1.msra.mxu0 %v248
      %277 = vmatprep.subr.mxu0 0.0
      %278 = vmatpush1.msra.mxu0 %v249
      %279 = vmatprep.subr.mxu0 0.0
      %280 = vmatpush1.msra.mxu0 %v250
      %281 = vmatprep.subr.mxu0 0.0
      %282 = vmatpush1.msra.mxu0 %v251
      %283 = vmatprep.subr.mxu0 0.0
      %284 = vmatpush1.msra.mxu0 %v252
      %285 = vmatprep.subr.mxu0 0.0
      %286 = vmatpush1.msra.mxu0 0.0
      %287 = vmatprep.subr.mxu0 0.0
      %288 = vmatpush1.msra.mxu0 0.0
      %289 = vmatprep.subr.mxu0 0.0
      %290 = vmatpush1.msra.mxu0 0.0
      %291 = vmatprep.subr.mxu0 0.0
      %292 = vmatpush1.msra.mxu0 0.0
      %293 = vmatprep.subr.mxu0 0.0
      %294 = vmatpush1.msra.mxu0 0.0
      %295 = vmatprep.subr.mxu0 0.0
      %296 = vmatpush1.msra.mxu0 0.0
      %297 = vmatprep.subr.mxu0 0.0
      %298 = vmatpush1.msra.mxu0 0.0
      %299 = vmatprep.subr.mxu0 0.0
      %300 = vmatpush1.msra.mxu0 0.0
      %301 = vmatprep.subr.mxu0 0.0
      %302 = vmatpush1.msra.mxu0 0.0
      %303 = vmatprep.subr.mxu0 0.0
      %304 = vmatpush1.msra.mxu0 0.0
      %305 = vmatprep.subr.mxu0 0.0
      %306 = vmatpush1.msra.mxu0 0.0
      %307 = vmatprep.subr.mxu0 0.0
      %308 = vmatpush1.msra.mxu0 0.0
      %309 = vmatprep.subr.mxu0 0.0
      %310 = vmatpush1.msra.mxu0 0.0
      %311 = vmatprep.subr.mxu0 0.0
      %312 = vmatpush1.msra.mxu0 0.0
      %313 = vmatprep.subr.mxu0 0.0
      %314 = vmatpush1.msra.mxu0 0.0
      %315 = vmatprep.subr.mxu0 0.0
      %316 = vmatpush1.msra.mxu0 0.0
      %317 = vmatprep.subr.mxu0 0.0
      %318 = vmatpush1.msra.mxu0 0.0
      %319 = vmatprep.subr.mxu0 0.0
      %320 = vmatpush1.msra.mxu0 0.0
      %321 = vmatprep.subr.mxu0 0.0
      %322 = vmatpush1.msra.mxu0 0.0
      %323 = vmatprep.subr.mxu0 0.0
      %324 = vmatpush1.msra.mxu0 0.0
      %325 = vmatprep.subr.mxu0 0.0
      %326 = vmatpush1.msra.mxu0 0.0
      %327 = vmatprep.subr.mxu0 0.0
      %328 = vmatpush1.msra.mxu0 0.0
      %329 = vmatprep.subr.mxu0 0.0
      %330 = vmatpush1.msra.mxu0 0.0
      %331 = vmatprep.subr.mxu0 0.0
      %332 = vmatpush1.msra.mxu0 0.0
      %333 = vmatprep.mubr.f32.mxu0 0.0
      %334 = vmatmul.mubr.f32.gmra.mrb[0].mxu0 %v255
      %v335 = vpop.f32.mrb[0].mxu0
      %v336 = vadd.f32 0.0, %v335
      %v337 = vpop.f32.mrb[0].mxu0
      %338 = vmatprep.mubr.f32.mxu0 0.0
      %339 = vmatmul.mubr.f32.gmra.mrb[0].mxu0 %v258
      %v340 = vpop.f32.mrb[0].mxu0
      %v341 = vadd.f32 0.0, %v340
      %v342 = vpop.f32.mrb[0].mxu0
      %343 = vmatprep.mubr.f32.mxu0 0.0
      %344 = vmatmul.mubr.f32.gmra.mrb[0].mxu0 %v261
      %v345 = vpop.f32.mrb[0].mxu0
      %v346 = vadd.f32 0.0, %v345
      %v347 = vpop.f32.mrb[0].mxu0
      %348 = vmatprep.mubr.f32.mxu0 0.0
      %349 = vmatmul.mubr.f32.gmra.mrb[0].mxu0 %v264
      %v350 = vpop.f32.mrb[0].mxu0
      %v351 = vadd.f32 0.0, %v350
      %v352 = vpop.f32.mrb[0].mxu0
      %353 = vmatprep.mubr.f32.mxu0 0.0
      %354 = vmatmul.mubr.f32.gmra.mrb[0].mxu0 %v267
      %v355 = vpop.f32.mrb[0].mxu0
      %v356 = vadd.f32 0.0, %v355
      %v357 = vpop.f32.mrb[0].mxu0
      %358 = vdwg.mxu0
      %v360 = vsel %vm253, %v226, 0
      %v363 = vsel %vm253, %v227, 0
      %v366 = vsel %vm253, %v228, 0
      %v369 = vsel %vm253, %v229, 0
      %v372 = vsel %vm253, %v230, 0
      %374 = vmatprep.subr.mxu0 0.0
      %375 = vmatpush1.msra.mxu0 %v231
      %376 = vmatprep.subr.mxu0 0.0
      %377 = vmatpush1.msra.mxu0 %v232
      %378 = vmatprep.subr.mxu0 0.0
      %379 = vmatpush1.msra.mxu0 %v233
      %380 = vmatprep.subr.mxu0 0.0
      %381 = vmatpush1.msra.mxu0 %v234
      %382 = vmatprep.subr.mxu0 0.0
      %383 = vmatpush1.msra.mxu0 %v235
      %384 = vmatprep.subr.mxu0 0.0
      %385 = vmatpush1.msra.mxu0 %v236
      %386 = vmatprep.subr.mxu0 0.0
      %387 = vmatpush1.msra.mxu0 %v237
      %388 = vmatprep.subr.mxu0 0.0
      %389 = vmatpush1.msra.mxu0 %v238
      %390 = vmatprep.subr.mxu0 0.0
      %391 = vmatpush1.msra.mxu0 0.0
      %392 = vmatprep.subr.mxu0 0.0
      %393 = vmatpush1.msra.mxu0 0.0
      %394 = vmatprep.subr.mxu0 0.0
      %395 = vmatpush1.msra.mxu0 0.0
      %396 = vmatprep.subr.mxu0 0.0
      %397 = vmatpush1.msra.mxu0 0.0
      %398 = vmatprep.subr.mxu0 0.0
      %399 = vmatpush1.msra.mxu0 0.0
      %400 = vmatprep.subr.mxu0 0.0
      %401 = vmatpush1.msra.mxu0 0.0
      %402 = vmatprep.subr.mxu0 0.0
      %403 = vmatpush1.msra.mxu0 0.0
      %404 = vmatprep.subr.mxu0 0.0
      %405 = vmatpush1.msra.mxu0 0.0
      %406 = vmatprep.subr.mxu0 0.0
      %407 = vmatpush1.msra.mxu0 0.0
      %408 = vmatprep.subr.mxu0 0.0
      %409 = vmatpush1.msra.mxu0 0.0
      %410 = vmatprep.subr.mxu0 0.0
      %411 = vmatpush1.msra.mxu0 0.0
      %412 = vmatprep.subr.mxu0 0.0
      %413 = vmatpush1.msra.mxu0 0.0
      %414 = vmatprep.subr.mxu0 0.0
      %415 = vmatpush1.msra.mxu0 0.0
      %416 = vmatprep.subr.mxu0 0.0
      %417 = vmatpush1.msra.mxu0 0.0
      %418 = vmatprep.subr.mxu0 0.0
      %419 = vmatpush1.msra.mxu0 0.0
      %420 = vmatprep.subr.mxu0 0.0
      %421 = vmatpush1.msra.mxu0 0.0
      %422 = vmatprep.subr.mxu0 0.0
      %423 = vmatpush1.msra.mxu0 0.0
      %424 = vmatprep.subr.mxu0 0.0
      %425 = vmatpush1.msra.mxu0 0.0
      %426 = vmatprep.subr.mxu0 0.0
      %427 = vmatpush1.msra.mxu0 0.0
      %428 = vmatprep.subr.mxu0 0.0
      %429 = vmatpush1.msra.mxu0 0.0
      %430 = vmatprep.subr.mxu0 0.0
      %431 = vmatpush1.msra.mxu0 0.0
      %432 = vmatprep.subr.mxu0 0.0
      %433 = vmatpush1.msra.mxu0 0.0
      %434 = vmatprep.subr.mxu0 0.0
      %435 = vmatpush1.msra.mxu0 0.0
      %436 = vmatprep.subr.mxu0 0.0
      %437 = vmatpush1.msra.mxu0 0.0
      %438 = vmatprep.mubr.f32.mxu0 0.0
      %439 = vmatmul.mubr.f32.gmra.mrb[0].mxu0 %v360
      %v440 = vpop.f32.mrb[0].mxu0
      %v441 = vadd.f32 %v336, %v440
      %v442 = vpop.f32.mrb[0].mxu0
      %443 = vmatprep.mubr.f32.mxu0 0.0
      %444 = vmatmul.mubr.f32.gmra.mrb[0].mxu0 %v363
      %v445 = vpop.f32.mrb[0].mxu0
      %v446 = vadd.f32 %v341, %v445
      %v447 = vpop.f32.mrb[0].mxu0
      %448 = vmatprep.mubr.f32.mxu0 0.0
      %449 = vmatmul.mubr.f32.gmra.mrb[0].mxu0 %v366
      %v450 = vpop.f32.mrb[0].mxu0
      %v451 = vadd.f32 %v346, %v450
      %v452 = vpop.f32.mrb[0].mxu0
      %453 = vmatprep.mubr.f32.mxu0 0.0
      %454 = vmatmul.mubr.f32.gmra.mrb[0].mxu0 %v369
      %v455 = vpop.f32.mrb[0].mxu0
      %v456 = vadd.f32 %v351, %v455
      %v457 = vpop.f32.mrb[0].mxu0
      %458 = vmatprep.mubr.f32.mxu0 0.0
      %459 = vmatmul.mubr.f32.gmra.mrb[0].mxu0 %v372
      %v460 = vpop.f32.mrb[0].mxu0
      %v461 = vadd.f32 %v356, %v460
      %v462 = vpop.f32.mrb[0].mxu0
      %463 = vdwg.mxu0
      %v464 = vld [vmem:[%s219 + $0x5] sm:$0xff]
      %v465 = vld [vmem:[%s219 + $0xd] sm:$0xff]
      %v466 = vld [vmem:[%s219 + $0x15] sm:$0xff]
      %v467 = vld [vmem:[%s219 + $0x1d] sm:$0xff]
      %v468 = vld [vmem:[%s219 + $0x25] sm:$0xff]
      %s469 = scalar_lea.vmem %s1, 128
      %v470 = vld [vmem:[%s469] sm:$0xff]
      %v471 = vld [vmem:[%s469 + $0x8] sm:$0xff]
      %v472 = vld [vmem:[%s469 + $0x10] sm:$0xff]
      %v473 = vld [vmem:[%s469 + $0x18] sm:$0xff]
      %v474 = vld [vmem:[%s469 + $0x20] sm:$0xff]
      %v475 = vld [vmem:[%s469 + $0x28] sm:$0xff]
      %v476 = vld [vmem:[%s469 + $0x30] sm:$0xff]
      %v477 = vld [vmem:[%s469 + $0x38] sm:$0xff]
      %v479 = vsel %vm253, %v464, 0
      %v482 = vsel %vm253, %v465, 0
      %v485 = vsel %vm253, %v466, 0
      %v488 = vsel %vm253, %v467, 0
      %v491 = vsel %vm253, %v468, 0
      %493 = vmatprep.subr.mxu0 0.0
      %494 = vmatpush1.msra.mxu0 %v470
      %495 = vmatprep.subr.mxu0 0.0
      %496 = vmatpush1.msra.mxu0 %v471
      %497 = vmatprep.subr.mxu0 0.0
      %498 = vmatpush1.msra.mxu0 %v472
      %499 = vmatprep.subr.mxu0 0.0
      %500 = vmatpush1.msra.mxu0 %v473
      %501 = vmatprep.subr.mxu0 0.0
      %502 = vmatpush1.msra.mxu0 %v474
      %503 = vmatprep.subr.mxu0 0.0
      %504 = vmatpush1.msra.mxu0 %v475
      %505 = vmatprep.subr.mxu0 0.0
      %506 = vmatpush1.msra.mxu0 %v476
      %507 = vmatprep.subr.mxu0 0.0
      %508 = vmatpush1.msra.mxu0 %v477
      %509 = vmatprep.subr.mxu0 0.0
      %510 = vmatpush1.msra.mxu0 0.0
      %511 = vmatprep.subr.mxu0 0.0
      %512 = vmatpush1.msra.mxu0 0.0
      %513 = vmatprep.subr.mxu0 0.0
      %514 = vmatpush1.msra.mxu0 0.0
      %515 = vmatprep.subr.mxu0 0.0
      %516 = vmatpush1.msra.mxu0 0.0
      %517 = vmatprep.subr.mxu0 0.0
      %518 = vmatpush1.msra.mxu0 0.0
      %519 = vmatprep.subr.mxu0 0.0
      %520 = vmatpush1.msra.mxu0 0.0
      %521 = vmatprep.subr.mxu0 0.0
      %522 = vmatpush1.msra.mxu0 0.0
      %523 = vmatprep.subr.mxu0 0.0
      %524 = vmatpush1.msra.mxu0 0.0
      %525 = vmatprep.subr.mxu0 0.0
      %526 = vmatpush1.msra.mxu0 0.0
      %527 = vmatprep.subr.mxu0 0.0
      %528 = vmatpush1.msra.mxu0 0.0
      %529 = vmatprep.subr.mxu0 0.0
      %530 = vmatpush1.msra.mxu0 0.0
      %531 = vmatprep.subr.mxu0 0.0
      %532 = vmatpush1.msra.mxu0 0.0
      %533 = vmatprep.subr.mxu0 0.0
      %534 = vmatpush1.msra.mxu0 0.0
      %535 = vmatprep.subr.mxu0 0.0
      %536 = vmatpush1.msra.mxu0 0.0
      %537 = vmatprep.subr.mxu0 0.0
      %538 = vmatpush1.msra.mxu0 0.0
      %539 = vmatprep.subr.mxu0 0.0
      %540 = vmatpush1.msra.mxu0 0.0
      %541 = vmatprep.subr.mxu0 0.0
      %542 = vmatpush1.msra.mxu0 0.0
      %543 = vmatprep.subr.mxu0 0.0
      %544 = vmatpush1.msra.mxu0 0.0
      %545 = vmatprep.subr.mxu0 0.0
      %546 = vmatpush1.msra.mxu0 0.0
      %547 = vmatprep.subr.mxu0 0.0
      %548 = vmatpush1.msra.mxu0 0.0
      %549 = vmatprep.subr.mxu0 0.0
      %550 = vmatpush1.msra.mxu0 0.0
      %551 = vmatprep.subr.mxu0 0.0
      %552 = vmatpush1.msra.mxu0 0.0
      %553 = vmatprep.subr.mxu0 0.0
      %554 = vmatpush1.msra.mxu0 0.0
      %555 = vmatprep.subr.mxu0 0.0
      %556 = vmatpush1.msra.mxu0 0.0
      %557 = vmatprep.mubr.f32.mxu0 0.0
      %558 = vmatmul.mubr.f32.gmra.mrb[0].mxu0 %v479
      %v559 = vpop.f32.mrb[0].mxu0
      %v560 = vadd.f32 0.0, %v559
      %v561 = vpop.f32.mrb[0].mxu0
      %562 = vmatprep.mubr.f32.mxu0 0.0
      %563 = vmatmul.mubr.f32.gmra.mrb[0].mxu0 %v482
      %v564 = vpop.f32.mrb[0].mxu0
      %v565 = vadd.f32 0.0, %v564
      %v566 = vpop.f32.mrb[0].mxu0
      %567 = vmatprep.mubr.f32.mxu0 0.0
      %568 = vmatmul.mubr.f32.gmra.mrb[0].mxu0 %v485
      %v569 = vpop.f32.mrb[0].mxu0
      %v570 = vadd.f32 0.0, %v569
      %v571 = vpop.f32.mrb[0].mxu0
      %572 = vmatprep.mubr.f32.mxu0 0.0
      %573 = vmatmul.mubr.f32.gmra.mrb[0].mxu0 %v488
      %v574 = vpop.f32.mrb[0].mxu0
      %v575 = vadd.f32 0.0, %v574
      %v576 = vpop.f32.mrb[0].mxu0
      %577 = vmatprep.mubr.f32.mxu0 0.0
      %578 = vmatmul.mubr.f32.gmra.mrb[0].mxu0 %v491
      %v579 = vpop.f32.mrb[0].mxu0
      %v580 = vadd.f32 0.0, %v579
      %v581 = vpop.f32.mrb[0].mxu0
      %582 = vdwg.mxu0
      %v583 = vadd.f32 %v441, %v560
      %v584 = vadd.f32 %v446, %v565
      %v585 = vadd.f32 %v451, %v570
      %v586 = vadd.f32 %v456, %v575
      %v587 = vadd.f32 %v461, %v580
      %v588 = vld [vmem:[%s219 + $0x6] sm:$0xff]
      %v589 = vld [vmem:[%s219 + $0xe] sm:$0xff]
      %v590 = vld [vmem:[%s219 + $0x16] sm:$0xff]
      %v591 = vld [vmem:[%s219 + $0x1e] sm:$0xff]
      %v592 = vld [vmem:[%s219 + $0x26] sm:$0xff]
      %s593 = scalar_lea.vmem %s1, 192
      %v594 = vld [vmem:[%s593] sm:$0xff]
      %v595 = vld [vmem:[%s593 + $0x8] sm:$0xff]
      %v596 = vld [vmem:[%s593 + $0x10] sm:$0xff]
      %v597 = vld [vmem:[%s593 + $0x18] sm:$0xff]
      %v598 = vld [vmem:[%s593 + $0x20] sm:$0xff]
      %v599 = vld [vmem:[%s593 + $0x28] sm:$0xff]
      %v600 = vld [vmem:[%s593 + $0x30] sm:$0xff]
      %v601 = vld [vmem:[%s593 + $0x38] sm:$0xff]
      %v603 = vsel %vm253, %v588, 0
      %v606 = vsel %vm253, %v589, 0
      %v609 = vsel %vm253, %v590, 0
      %v612 = vsel %vm253, %v591, 0
      %v615 = vsel %vm253, %v592, 0
      %617 = vmatprep.subr.mxu0 0.0
      %618 = vmatpush1.msra.mxu0 %v594
      %619 = vmatprep.subr.mxu0 0.0
      %620 = vmatpush1.msra.mxu0 %v595
      %621 = vmatprep.subr.mxu0 0.0
      %622 = vmatpush1.msra.mxu0 %v596
      %623 = vmatprep.subr.mxu0 0.0
      %624 = vmatpush1.msra.mxu0 %v597
      %625 = vmatprep.subr.mxu0 0.0
      %626 = vmatpush1.msra.mxu0 %v598
      %627 = vmatprep.subr.mxu0 0.0
      %628 = vmatpush1.msra.mxu0 %v599
      %629 = vmatprep.subr.mxu0 0.0
      %630 = vmatpush1.msra.mxu0 %v600
      %631 = vmatprep.subr.mxu0 0.0
      %632 = vmatpush1.msra.mxu0 %v601
      %633 = vmatprep.subr.mxu0 0.0
      %634 = vmatpush1.msra.mxu0 0.0
      %635 = vmatprep.subr.mxu0 0.0
      %636 = vmatpush1.msra.mxu0 0.0
      %637 = vmatprep.subr.mxu0 0.0
      %638 = vmatpush1.msra.mxu0 0.0
      %639 = vmatprep.subr.mxu0 0.0
      %640 = vmatpush1.msra.mxu0 0.0
      %641 = vmatprep.subr.mxu0 0.0
      %642 = vmatpush1.msra.mxu0 0.0
      %643 = vmatprep.subr.mxu0 0.0
      %644 = vmatpush1.msra.mxu0 0.0
      %645 = vmatprep.subr.mxu0 0.0
      %646 = vmatpush1.msra.mxu0 0.0
      %647 = vmatprep.subr.mxu0 0.0
      %648 = vmatpush1.msra.mxu0 0.0
      %649 = vmatprep.subr.mxu0 0.0
      %650 = vmatpush1.msra.mxu0 0.0
      %651 = vmatprep.subr.mxu0 0.0
      %652 = vmatpush1.msra.mxu0 0.0
      %653 = vmatprep.subr.mxu0 0.0
      %654 = vmatpush1.msra.mxu0 0.0
      %655 = vmatprep.subr.mxu0 0.0
      %656 = vmatpush1.msra.mxu0 0.0
      %657 = vmatprep.subr.mxu0 0.0
      %658 = vmatpush1.msra.mxu0 0.0
      %659 = vmatprep.subr.mxu0 0.0
      %660 = vmatpush1.msra.mxu0 0.0
      %661 = vmatprep.subr.mxu0 0.0
      %662 = vmatpush1.msra.mxu0 0.0
      %663 = vmatprep.subr.mxu0 0.0
      %664 = vmatpush1.msra.mxu0 0.0
      %665 = vmatprep.subr.mxu0 0.0
      %666 = vmatpush1.msra.mxu0 0.0
      %667 = vmatprep.subr.mxu0 0.0
      %668 = vmatpush1.msra.mxu0 0.0
      %669 = vmatprep.subr.mxu0 0.0
      %670 = vmatpush1.msra.mxu0 0.0
      %671 = vmatprep.subr.mxu0 0.0
      %672 = vmatpush1.msra.mxu0 0.0
      %673 = vmatprep.subr.mxu0 0.0
      %674 = vmatpush1.msra.mxu0 0.0
      %675 = vmatprep.subr.mxu0 0.0
      %676 = vmatpush1.msra.mxu0 0.0
      %677 = vmatprep.subr.mxu0 0.0
      %678 = vmatpush1.msra.mxu0 0.0
      %679 = vmatprep.subr.mxu0 0.0
      %680 = vmatpush1.msra.mxu0 0.0
      %681 = vmatprep.mubr.f32.mxu0 0.0
      %682 = vmatmul.mubr.f32.gmra.mrb[0].mxu0 %v603
      %v683 = vpop.f32.mrb[0].mxu0
      %v684 = vadd.f32 0.0, %v683
      %v685 = vpop.f32.mrb[0].mxu0
      %686 = vmatprep.mubr.f32.mxu0 0.0
      %687 = vmatmul.mubr.f32.gmra.mrb[0].mxu0 %v606
      %v688 = vpop.f32.mrb[0].mxu0
      %v689 = vadd.f32 0.0, %v688
      %v690 = vpop.f32.mrb[0].mxu0
      %691 = vmatprep.mubr.f32.mxu0 0.0
      %692 = vmatmul.mubr.f32.gmra.mrb[0].mxu0 %v609
      %v693 = vpop.f32.mrb[0].mxu0
      %v694 = vadd.f32 0.0, %v693
      %v695 = vpop.f32.mrb[0].mxu0
      %696 = vmatprep.mubr.f32.mxu0 0.0
      %697 = vmatmul.mubr.f32.gmra.mrb[0].mxu0 %v612
      %v698 = vpop.f32.mrb[0].mxu0
      %v699 = vadd.f32 0.0, %v698
      %v700 = vpop.f32.mrb[0].mxu0
      %701 = vmatprep.mubr.f32.mxu0 0.0
      %702 = vmatmul.mubr.f32.gmra.mrb[0].mxu0 %v615
      %v703 = vpop.f32.mrb[0].mxu0
      %v704 = vadd.f32 0.0, %v703
      %v705 = vpop.f32.mrb[0].mxu0
      %706 = vdwg.mxu0
      %v707 = vadd.f32 %v583, %v684
      %v708 = vadd.f32 %v584, %v689
      %v709 = vadd.f32 %v585, %v694
      %v710 = vadd.f32 %v586, %v699
      %v711 = vadd.f32 %v587, %v704
      %v712 = vld [vmem:[%s2] sm:$0x1]
      %v714 = vlaneseq
      %v715 = vshrl.u32 %v714, 7
      %v716 = vsub.s32 0, %v715
      %v717 = vrot.slane %v712, %v716
      %v719 = vadd.f32 %v707, %v717
      %v720 = vadd.f32 %v708, %v717
      %v721 = vadd.f32 %v709, %v717
      %v722 = vadd.f32 %v710, %v717
      %v723 = vadd.f32 %v711, %v717
      %724 = vadd.xlane.f32.xlu0 %v719
      %v725 = vpop.xlane.xlu0 %724
      %726 = vadd.xlane.f32.xlu0 %v720
      %v727 = vpop.xlane.xlu0 %726
      %728 = vadd.xlane.f32.xlu0 %v721
      %v729 = vpop.xlane.xlu0 %728
      %730 = vadd.xlane.f32.xlu0 %v722
      %v731 = vpop.xlane.xlu0 %730
      %732 = vadd.xlane.f32.xlu0 %v723
      %v733 = vpop.xlane.xlu0 %732
      %v734 = vmul.f32 %v725, 0.03125
      %v735 = vmul.f32 %v727, 0.03125
      %v736 = vmul.f32 %v729, 0.03125
      %v737 = vmul.f32 %v731, 0.03125
      %v738 = vmul.f32 %v733, 0.03125
      %v739 = vmul.f32 %v719, %v719
      %v740 = vmul.f32 %v720, %v720
      %v741 = vmul.f32 %v721, %v721
      %v742 = vmul.f32 %v722, %v722
      %v743 = vmul.f32 %v723, %v723
      %744 = vadd.xlane.f32.xlu0 %v739
      %v745 = vpop.xlane.xlu0 %744
      %746 = vadd.xlane.f32.xlu0 %v740
      %v747 = vpop.xlane.xlu0 %746
      %748 = vadd.xlane.f32.xlu0 %v741
      %v749 = vpop.xlane.xlu0 %748
      %750 = vadd.xlane.f32.xlu0 %v742
      %v751 = vpop.xlane.xlu0 %750
      %752 = vadd.xlane.f32.xlu0 %v743
      %v753 = vpop.xlane.xlu0 %752
      %v754 = vmul.f32 %v745, 0.03125
      %v755 = vmul.f32 %v747, 0.03125
      %v756 = vmul.f32 %v749, 0.03125
      %v757 = vmul.f32 %v751, 0.03125
      %v758 = vmul.f32 %v753, 0.03125
      %v759 = vmul.f32 %v734, %v734
      %v760 = vmul.f32 %v735, %v735
      %v761 = vmul.f32 %v736, %v736
      %v762 = vmul.f32 %v737, %v737
      %v763 = vmul.f32 %v738, %v738
      %v764 = vsub.f32 %v754, %v759
      %v765 = vsub.f32 %v755, %v760
      %v766 = vsub.f32 %v756, %v761
      %v767 = vsub.f32 %v757, %v762
      %v768 = vsub.f32 %v758, %v763
      %v769 = vmax.f32 %v764, 0.0
      %v770 = vmax.f32 %v765, 0.0
      %v771 = vmax.f32 %v766, 0.0
      %v772 = vmax.f32 %v767, 0.0
      %v773 = vmax.f32 %v768, 0.0
      %v774 = vadd.f32 %v769, 1e-05
      %v775 = vadd.f32 %v770, 1e-05
      %v776 = vadd.f32 %v771, 1e-05
      %v777 = vadd.f32 %v772, 1e-05
      %v778 = vadd.f32 %v773, 1e-05
      %v779 = vrsqrt.pop %v774
      %v780 = vrsqrt.pop %v775
      %v781 = vrsqrt.pop %v776
      %v782 = vrsqrt.pop %v777
      %v783 = vrsqrt.pop %v778
      %v784 = vsub.f32 %v719, %v734
      %v785 = vsub.f32 %v720, %v735
      %v786 = vsub.f32 %v721, %v736
      %v787 = vsub.f32 %v722, %v737
      %v788 = vsub.f32 %v723, %v738
      %v789 = vmul.f32 %v784, %v779
      %v790 = vmul.f32 %v785, %v780
      %v791 = vmul.f32 %v786, %v781
      %v792 = vmul.f32 %v787, %v782
      %v793 = vmul.f32 %v788, %v783
      %v794 = vld [vmem:[%s3] sm:$0x1]
      %v796 = vlaneseq
      %v797 = vshrl.u32 %v796, 7
      %v798 = vsub.s32 0, %v797
      %v799 = vrot.slane %v794, %v798
      %v801 = vmul.f32 %v789, %v799
      %v802 = vmul.f32 %v790, %v799
      %v803 = vmul.f32 %v791, %v799
      %v804 = vmul.f32 %v792, %v799
      %v805 = vmul.f32 %v793, %v799
      %v806 = vld [vmem:[%s4] sm:$0x1]
      %v808 = vlaneseq
      %v809 = vshrl.u32 %v808, 7
      %v810 = vsub.s32 0, %v809
      %v811 = vrot.slane %v806, %v810
      %v813 = vadd.f32 %v801, %v811
      %v814 = vadd.f32 %v802, %v811
      %v815 = vadd.f32 %v803, %v811
      %v816 = vadd.f32 %v804, %v811
      %v817 = vadd.f32 %v805, %v811
      %818 = vst [vmem:[%s224] sm:$0xff] %v813
      %819 = vst [vmem:[%s224 + $0x8] sm:$0xff] %v814
      %820 = vst [vmem:[%s224 + $0x10] sm:$0xff] %v815
      %821 = vst [vmem:[%s224 + $0x18] sm:$0xff] %v816
      %822 = vst [vmem:[%s224 + $0x20] sm:$0xff] %v817
      %s823 = smul.u32 5, %s16
      %p824 = scmp.lt.s32.totalorder %s823, 9
      %s825 = scalar_select %p824, %s823, 9
      %s826 = smul.addr %s825, 8
      %s827 = scalar_lea.vmem %s5, %s826
      // Predicated region
      $region41: #{patch_embed_forward.1} parent=39 // pred_check
        %p828 = pneg %p144
      $region42: #{patch_embed_forward.1} parent=39 // pred_check_branch
        %830 = sbr.rel (%p828) target = $region44
      $region43: #{patch_embed_forward.1} parent=39 // pred_region
        %s831 = smul.u32 5, %s16
      $region44: #{patch_embed_forward.1} parent=39 // pred_fallthru
        _
    $region40: #{patch_embed_forward.1} parent=5 // pred_fallthru
      _
    %p832 = scmp.le.s32.totalorder 2, %s11
    // Predicated region
    $region45: #{patch_embed_forward.1} parent=5 // pred_check
      %p833 = pneg %p832
    $region46: #{patch_embed_forward.1} parent=5 // pred_check_branch
      %835 = sbr.rel (%p833) target = $region48
    $region47: #{patch_embed_forward.1} parent=5 // pred_region
      %s836 = ssub.s32 %s11, 2
      // Predicated region
      $region49: #{patch_embed_forward.1} parent=47 // pred_check
        %p837 = pneg %p150
      $region50: #{patch_embed_forward.1} parent=47 // pred_check_branch
        %839 = sbr.rel (%p837) target = $region52
      $region51: #{patch_embed_forward.1} parent=47 // pred_region
        %s840 = smul.u32 5, %s17
        %p841 = scmp.lt.s32.totalorder %s840, 9
        %s842 = scalar_select %p841, %s840, 9
        %s843 = smul.addr %s842, 8
        %s844 = scalar_lea.vmem %s5, %s843
      $region52: #{patch_embed_forward.1} parent=47 // pred_fallthru
        _
    $region48: #{patch_embed_forward.1} parent=5 // pred_fallthru
      _
  $region6: #{patch_embed_forward.1} parent=0 // loop_footer
    %s15 = sadd.s32 1, %s11
  $region7: #{patch_embed_forward.1} parent=0 // loop_footer_branch
    %10 = sbr.rel target = $region3
  $region8: #{patch_embed_forward.1} parent=0 // loop_exit
    _

</llo_original>
